<compile_context>
chip_gen: v6e
topology: v6e:2x2x1
jax: 0.10.0
libtpu: 0.0.40
codegen_flags: <defaults>
</compile_context>

<pallas_src>
import jax
import jax.numpy as jnp
from jax.experimental import pallas as pl
from jax.experimental.pallas import tpu as pltpu


def _compress_kernel(w_ref, x_ref, o_ref):
    # w_ref: (E_out, E_in)   x_ref: (tB, E_in, tD)   o_ref: (tB, E_out, tD)
    nb = x_ref.shape[0]          # static (block shape)
    w = w_ref[...]               # resident, grid-invariant

    def compute(b):
        o_ref[b] = jnp.dot(
            w, x_ref[b], preferred_element_type=jnp.float32
        ).astype(o_ref.dtype)

    if nb <= 8:
        # Short, fixed trip count: unroll for LLO scheduler visibility.
        for b in range(nb):
            compute(b)
    else:
        # Large batch blocks (D < 128 path): in-kernel scf.for.
        pl.loop(0, nb)(compute)


def _vmem_plan():
    """(per-step data budget bytes, vmem_limit_bytes) tuned per TPU generation."""
    kind = ""
    try:
        kind = jax.devices()[0].device_kind.lower()
    except Exception:
        pass
    mib = 1024 * 1024
    if "v7" in kind:     # 64 MiB physical VMEM per TensorCore: stay well under
        return 24 * mib, 48 * mib
    if "v6" in kind:     # 128 MiB physical, fast HBM: go big, fewer grid steps
        return 64 * mib, 96 * mib
    if "v5" in kind:     # 128 MiB physical, but 16 MiB scoped default on v5e
        return 40 * mib, 64 * mib
    return 24 * mib, 48 * mib   # unknown chip: v7x-safe fallback


def linear_compress_block(
    inputs: jax.Array,
    weight: jax.Array,
    *,
    compute_dtype=None,
    out_dtype=None,
) -> jax.Array:
    """inputs: (B, E_in, D), weight: (E_in, E_out) -> (B, E_out, D)."""
    B, E_in, D = inputs.shape
    E_in_w, E_out = weight.shape
    assert E_in == E_in_w

    if compute_dtype is None:
        compute_dtype = inputs.dtype
    if out_dtype is None:
        out_dtype = inputs.dtype
    # TODO(synk): on v5e (~820 GB/s HBM) callers should prefer
    # compute_dtype=bfloat16 where tolerances allow; not auto-switched here so
    # the default path stays bitwise-comparable to the PyTorch f32 forward.

    x = inputs.astype(compute_dtype)                    # no-op unless cast requested
    w_t = jnp.transpose(weight).astype(compute_dtype)   # (E_out, E_in), tiny one-off

    x_sz = jnp.dtype(compute_dtype).itemsize
    o_sz = jnp.dtype(out_dtype).itemsize

    data_budget, vmem_limit = _vmem_plan()
    # Per-step VMEM: double-buffered x and out blocks; the grid-invariant weight
    # is conservatively counted twice in case the pipeline double-buffers it.
    avail = max(data_budget - 2 * E_out * E_in * x_sz, 1 << 20)
    per_col = 2 * (E_in * x_sz + E_out * o_sz)   # bytes per lane column, per batch row

    if D >= 128:
        tB = 1
        tD = max(128, min(D, (avail // per_col) // 128 * 128))
        if tD >= D:
            tD = D   # full-extent lane block (legal even if D % 128 != 0)
            if B == 1 and D >= 256:
                # Keep >= 2 grid steps so both v7x TensorCores get work.
                tD = max(128, (D // 2) // 128 * 128)
    else:
        tD = D                                         # full-extent lane block
        tB = max(1, min(B, avail // (per_col * D)))    # several batches per block
        if tB >= B and B >= 2:
            tB = pl.cdiv(B, 2)                         # keep >= 2 grid steps
    grid = (pl.cdiv(B, tB), pl.cdiv(D, tD))

    cost = pl.CostEstimate(
        flops=2 * B * E_out * E_in * D,
        transcendentals=0,
        bytes_accessed=(
            B * E_in * D * x_sz          # x read
            + E_in * E_out * x_sz        # weight read (once)
            + B * E_out * D * o_sz       # output write
        ),
    )

    return pl.pallas_call(
        _compress_kernel,
        out_shape=jax.ShapeDtypeStruct((B, E_out, D), out_dtype),
        grid_spec=pltpu.PrefetchScalarGridSpec(
            num_scalar_prefetch=0,
            grid=grid,
            in_specs=[
                # Grid-invariant weight tile: fetched once, stays resident.
                pl.BlockSpec((E_out, E_in), lambda bi, di: (0, 0)),
                # Native-layout x block: no wrapper transpose/reshape passes.
                pl.BlockSpec((tB, E_in, tD), lambda bi, di: (bi, 0, di)),
            ],
            out_specs=pl.BlockSpec((tB, E_out, tD), lambda bi, di: (bi, 0, di)),
        ),
        compiler_params=pltpu.CompilerParams(
            dimension_semantics=("parallel", "parallel"),
            vmem_limit_bytes=vmem_limit,
        ),
        cost_estimate=cost,
    )(w_t, x)


def init_weight(key, num_emb_in: int, num_emb_out: int) -> jax.Array:
    # nn.init.kaiming_uniform_ defaults: a=0, mode='fan_in', nonlinearity='leaky_relu'.
    # For the module's (num_emb_in, num_emb_out) parameter, PyTorch fan_in =
    # tensor.size(1) = num_emb_out, so bound = sqrt(2)*sqrt(3/fan_in) = sqrt(6/num_emb_out).
    bound = (6.0 / num_emb_out) ** 0.5
    return jax.random.uniform(
        key, (num_emb_in, num_emb_out), dtype=jnp.float32,
        minval=-bound, maxval=bound,
    )


if __name__ == "__main__":
    key = jax.random.PRNGKey(0)
    k_x, k_w = jax.random.split(key)

    B, num_emb_in, num_emb_out, dim_emb = 2, 8, 4, 32

    x = jax.random.normal(k_x, (B, num_emb_in, dim_emb), dtype=jnp.float32)
    w = init_weight(k_w, num_emb_in, num_emb_out)

    # f32 path (D < 128 branch) — matches the PyTorch forward.
    out = jax.block_until_ready(linear_compress_block(x, w))
    ref = jnp.einsum("bid,ij->bjd", x, w)
    assert out.shape == (B, num_emb_out, dim_emb)
    assert jnp.allclose(out, ref, atol=1e-5, rtol=1e-5)

    # bf16 compute path (halved HBM read traffic) — relaxed tolerance.
    out_bf16 = jax.block_until_ready(
        linear_compress_block(x, w, compute_dtype=jnp.bfloat16)
    )
    assert out_bf16.shape == (B, num_emb_out, dim_emb)
    assert jnp.allclose(out_bf16, ref, atol=2e-2, rtol=2e-2)

    # Exercise the lane-tiled (D >= 128) branch at a modest size.
    dim_emb2 = 256
    x2 = jax.random.normal(k_x, (B, num_emb_in, dim_emb2), dtype=jnp.float32)
    out2 = jax.block_until_ready(linear_compress_block(x2, w))
    ref2 = jnp.einsum("bid,ij->bjd", x2, w)
    assert out2.shape == (B, num_emb_out, dim_emb2)
    assert jnp.allclose(out2, ref2, atol=1e-5, rtol=1e-5)

    print("KERNEL_OK")
</pallas_src>

<mosaic_0001>
module attributes {stable_mosaic.version = 11 : i64} {
  func.func @_compress_kernel(%arg0: i32, %arg1: i32, %arg2: memref<4x8xf32, #tpu.memory_space<vmem>>, %arg3: memref<1x8x32xf32, #tpu.memory_space<vmem>>, %arg4: memref<1x4x32xf32, #tpu.memory_space<vmem>>) attributes {dimension_semantics = [#tpu.dimension_semantics<parallel>, #tpu.dimension_semantics<parallel>], iteration_bounds = array<i64: 2, 1>, scalar_prefetch = 0 : i64, scratch_operands = 0 : i64, tpu.core_type = #tpu.core_type<tc>, window_params = [{pipeline_mode = #tpu.pipeline_mode<synchronous>, transform_indices = @transform_0, window_bounds = array<i64: 4, 8>}, {transform_indices = @transform_1, window_bounds = array<i64: 1, 8, 32>}, {transform_indices = @transform_2, window_bounds = array<i64: 1, 4, 32>}]} {
    %c0 = arith.constant 0 : index
    %c0_0 = arith.constant 0 : index
    %0 = vector.load %arg2[%c0, %c0_0] : memref<4x8xf32, #tpu.memory_space<vmem>>, vector<4x8xf32>
    %c0_1 = arith.constant 0 : index
    %c0_2 = arith.constant 0 : index
    %c0_3 = arith.constant 0 : index
    %1 = vector.load %arg3[%c0_1, %c0_2, %c0_3] : memref<1x8x32xf32, #tpu.memory_space<vmem>>, vector<1x8x32xf32>
    %2 = vector.shape_cast %1 : vector<1x8x32xf32> to vector<8x32xf32>
    %cst = arith.constant dense<0.000000e+00> : vector<4x32xf32>
    %3 = tpu.matmul %0, %2, %cst {dimension_numbers = #tpu.dot_dimension_numbers<[1], [0], [0], [1], [0, 0, 1, 1], [], []>} : vector<4x8xf32>, vector<8x32xf32>, vector<4x32xf32> -> vector<4x32xf32>
    %c0_4 = arith.constant 0 : index
    %c0_5 = arith.constant 0 : index
    %c0_6 = arith.constant 0 : index
    %4 = vector.load %arg4[%c0_4, %c0_5, %c0_6] : memref<1x4x32xf32, #tpu.memory_space<vmem>>, vector<1x4x32xf32>
    %5 = vector.shape_cast %4 : vector<1x4x32xf32> to vector<4x32xf32>
    %6 = vector.shape_cast %3 : vector<4x32xf32> to vector<1x4x32xf32>
    tpu.vector_store %arg4[%c0_4, %c0_5, %c0_6], %6 {strides = array<i32>} : memref<1x4x32xf32, #tpu.memory_space<vmem>>, vector<1x4x32xf32>,
    return
  }
  func.func @transform_0(%arg0: i32, %arg1: i32) -> (i32, i32) {
    %c0_i32 = arith.constant 0 : i32
    %c0_i32_0 = arith.constant 0 : i32
    %c0_i32_1 = arith.constant 0 : i32
    return %c0_i32, %c0_i32_0 : i32, i32
  }
  func.func @transform_1(%arg0: i32, %arg1: i32) -> (i32, i32, i32) {
    %c0_i32 = arith.constant 0 : i32
    %c0_i32_0 = arith.constant 0 : i32
    return %arg0, %c0_i32, %arg1 : i32, i32, i32
  }
  func.func @transform_2(%arg0: i32, %arg1: i32) -> (i32, i32, i32) {
    %c0_i32 = arith.constant 0 : i32
    %c0_i32_0 = arith.constant 0 : i32
    return %arg0, %c0_i32, %arg1 : i32, i32, i32
  }
}

</mosaic_0001>

<llo_original>
// kernel: tpu_custom_call.1
$region0: #{tpu_custom_call.1}
  #allocation0 [shape = 'u32[]', space=smem, size = 0x4, offset = 0x4, fixed_abs, tag = 'smem constant byte address 0x4 - core index']
  #allocation1 [shape = 'u32[144,128]{1,0:T(1,128)}', space=vmem, size = 0x12000, scoped, tag = 'internal scratch']
  %s0 = inlined_call_operand.hbm [shape: f32[4,8], index: 0, kind: input, shape index: {}]
  %s1 = inlined_call_operand.hbm [shape: f32[2,8,32], index: 1, kind: input, shape index: {}]
  %s2 = inlined_call_operand.hbm [shape: f32[2,4,32], index: 2, kind: output, shape index: {}]
  %s3 = sld [smem:[#allocation0]]
  $region49: #{tpu_custom_call.1} parent=0
    _
  %s5 = ssub.s32 1, %s3
  %s6 = scalar_select 0, %s5, %s3
  $region1: #{tpu_custom_call.1} parent=0
    #allocation2 [shape = 'u8[2048]{0}', space=vmem, size = 0x800, scoped, tag = 'input window, operand 0, single buffered']
    #allocation3 [shape = 's32[2]{0}', space=sflag, size = 0x8, scoped, tag = 'scoped memory for tpu_custom_call.1']
    #allocation4 [shape = 's32[2]{0}', space=sflag, size = 0x8, scoped, tag = 'scoped memory for tpu_custom_call.1']
    #allocation5 [shape = 'u8[8192]{0}', space=vmem, size = 0x2000, scoped, tag = 'input window, operand 1']
    #allocation6 [shape = 's32[2]{0}', space=sflag, size = 0x8, scoped, tag = 'scoped memory for tpu_custom_call.1']
    #allocation7 [shape = 'u8[4096]{0}', space=vmem, size = 0x1000, scoped, tag = 'output window, operand 0']
    %7 = vsyncpa [#allocation3], 0
    %8 = vsyncpa [#allocation6], 0
    %s9 = scalar_lea.sflag [#allocation6], 1
    %10 = vsyncpa %s9, 0
    %11 = vsyncpa [#allocation4], 0
    %s12 = scalar_lea.sflag [#allocation4], 1
    %13 = vsyncpa %s12, 0
    loop: start=0, step=1, limit=4
    $region2: #{tpu_custom_call.1} parent=1 // loop_pre_header
      _
    $region3: #{tpu_custom_call.1} parent=1 // loop_header
      %s15 = sphi 0, %s19
      %p16 = scmp.ge.s32.totalorder %s15, 4
      %s22 = sphi 0, %s34
      %s23 = sphi 0, %s30
      %s24 = sphi 0, %s22
      %s25 = sphi 0, %s23
      %s26 = sphi 0, %s24
      %s27 = sphi 0, %s25
      %s35 = sphi 0, %s35
      %s37 = sphi 0, %s35
      %s38 = sphi 0, %s37
      %s52 = sphi 0, %s38
      %s60 = sphi 0, %s62
      %s63 = sphi 0, %s60
      %s64 = sphi 0, %s63
      %s80 = sphi 0, %s64
      %s88 = sphi 0, %s90
      %s91 = sphi 0, %s88
      %s92 = sphi 0, %s91
      %s108 = sphi 0, %s92
    $region4: #{tpu_custom_call.1} parent=1 // loop_header_branch
      %18 = sbr.rel (%p16) target = $region8
    $region5: #{tpu_custom_call.1} parent=1 // loop_body
      %s20 = ssub.s32 %s15, 1
      %s21 = ssub.s32 %s15, 2
      %s28 = sadd.s32 1, %s23
      %p29 = scmp.ge.s32.totalorder %s28, 1
      %s30 = scalar_select %p29, 0, %s28
      %s31 = sadd.s32 1, %s22
      %s32 = scalar_select %p29, %s31, %s22
      %p33 = scmp.ge.s32.totalorder %s32, 2
      %s34 = scalar_select %p33, 0, %s32
      %s36 = sadd.s32 %s35, 1
      %p39 = scmp.eq.s32.totalorder %s15, 1
      %p40 = scmp.ne.s32.totalorder %s35, %s37
      %p41 = scmp.eq.s32.totalorder %s15, 0
      %p42 = por %p40, %p41
      %p43 = scmp.ne.s32.totalorder %s35, %s37
      %p44 = scmp.eq.s32.totalorder %s20, 1
      %p45 = por %p43, %p44
      %p46 = scmp.ne.s32.totalorder %s37, %s38
      %p47 = scmp.eq.s32.totalorder %s20, 0
      %p48 = por %p46, %p47
      %p49 = scmp.ne.s32.totalorder %s37, %s38
      %p50 = scmp.eq.s32.totalorder %s21, 1
      %p51 = por %p49, %p50
      %p53 = scmp.ne.s32.totalorder %s38, %s52
      %p54 = scmp.eq.s32.totalorder %s21, 0
      %p55 = por %p53, %p54
      %s56 = ssub.s32 %s22, %s34
      %s57 = ssub.s32 %s23, %s30
      %s58 = sor.u32 %s56, %s57
      %p59 = scmp.eq.s32.totalorder %s58, 0
      %s61 = sadd.s32 %s60, 1
      %s62 = scalar_select %p59, %s60, %s61
      %p65 = pneg %p59
      %p66 = scmp.eq.s32.totalorder %s15, 1
      %p67 = por %p65, %p66
      %p68 = scmp.ne.s32.totalorder %s60, %s63
      %p69 = scmp.eq.s32.totalorder %s15, 0
      %p70 = por %p68, %p69
      %p71 = scmp.ne.s32.totalorder %s60, %s63
      %p72 = scmp.eq.s32.totalorder %s20, 1
      %p73 = por %p71, %p72
      %p74 = scmp.ne.s32.totalorder %s63, %s64
      %p75 = scmp.eq.s32.totalorder %s20, 0
      %p76 = por %p74, %p75
      %p77 = scmp.ne.s32.totalorder %s63, %s64
      %p78 = scmp.eq.s32.totalorder %s21, 1
      %p79 = por %p77, %p78
      %p81 = scmp.ne.s32.totalorder %s64, %s80
      %p82 = scmp.eq.s32.totalorder %s21, 0
      %p83 = por %p81, %p82
      %s84 = ssub.s32 %s22, %s34
      %s85 = ssub.s32 %s23, %s30
      %s86 = sor.u32 %s84, %s85
      %p87 = scmp.eq.s32.totalorder %s86, 0
      %s89 = sadd.s32 %s88, 1
      %s90 = scalar_select %p87, %s88, %s89
      %p93 = pneg %p87
      %p94 = scmp.eq.s32.totalorder %s15, 1
      %p95 = por %p93, %p94
      %p96 = scmp.ne.s32.totalorder %s88, %s91
      %p97 = scmp.eq.s32.totalorder %s15, 0
      %p98 = por %p96, %p97
      %p99 = scmp.ne.s32.totalorder %s88, %s91
      %p100 = scmp.eq.s32.totalorder %s20, 1
      %p101 = por %p99, %p100
      %p102 = scmp.ne.s32.totalorder %s91, %s92
      %p103 = scmp.eq.s32.totalorder %s20, 0
      %p104 = por %p102, %p103
      %p105 = scmp.ne.s32.totalorder %s91, %s92
      %p106 = scmp.eq.s32.totalorder %s21, 1
      %p107 = por %p105, %p106
      %p109 = scmp.ne.s32.totalorder %s92, %s108
      %p110 = scmp.eq.s32.totalorder %s21, 0
      %p111 = por %p109, %p110
      %p112 = scmp.le.s32.totalorder 1, %s15
      %p113 = scmp.lt.s32.totalorder %s15, 3
      %p114 = pnand %p112, %p113
      %p115 = pneg %p114
      // Predicated region
      $region9: #{tpu_custom_call.1} parent=5 // pred_check
        _
      $region10: #{tpu_custom_call.1} parent=5 // pred_check_branch
        %117 = sbr.rel (%p114) target = $region12
      $region11: #{tpu_custom_call.1} parent=5 // pred_region
        %s118 = ssub.s32 %s15, 1
        // Predicated region
        $region13: #{tpu_custom_call.1} parent=11 // pred_check
          %p119 = pneg %p48
        $region14: #{tpu_custom_call.1} parent=11 // pred_check_branch
          %121 = sbr.rel (%p119) target = $region16
        $region15: #{tpu_custom_call.1} parent=11 // pred_region
          %s123 = ssub.s32 64, 64
          %124 = vsyncadd [#allocation3], %s123
          %s126 = sshll.u32 [#allocation2], 4
          %s127 = int_to_ptr.vmem [resolvable:$true] %s126
          %129 = dma.hbm_to_vmem [thread:$0]  %s0, 64, %s127, [#allocation3]
        $region16: #{tpu_custom_call.1} parent=11 // pred_fallthru
          _
      $region12: #{tpu_custom_call.1} parent=5 // pred_fallthru
        _
      %p130 = scmp.lt.s32.totalorder %s15, 2
      // Predicated region
      $region17: #{tpu_custom_call.1} parent=5 // pred_check
        %p131 = pneg %p130
      $region18: #{tpu_custom_call.1} parent=5 // pred_check_branch
        %133 = sbr.rel (%p131) target = $region20
      $region19: #{tpu_custom_call.1} parent=5 // pred_region
        // Predicated region
        $region21: #{tpu_custom_call.1} parent=19 // pred_check
          %p134 = pneg %p70
        $region22: #{tpu_custom_call.1} parent=19 // pred_check_branch
          %136 = sbr.rel (%p134) target = $region24
        $region23: #{tpu_custom_call.1} parent=19 // pred_region
          %s137 = sand.u32 %s60, 1
          %s138 = scalar_lea.sflag [#allocation6], %s137
          %s139 = sand.u32 %s60, 1
          %s140 = smul.addr %s139, 8
          %s141 = scalar_lea.vmem [#allocation5], %s140
          %s143 = ssub.s32 128, 128
          %144 = vsyncadd %s138, %s143
          %s145 = sadd.s32 %s23, %s22
          %s146 = smul.addr %s145, 128
          %s147 = scalar_lea.hbm %s1, %s146
          %s149 = sshll.u32 %s141, 4
          %s150 = int_to_ptr.vmem [resolvable:$true] %s149
          %152 = dma.hbm_to_vmem [thread:$0]  %s147, 128, %s150, %s138
        $region24: #{tpu_custom_call.1} parent=19 // pred_fallthru
          _
      $region20: #{tpu_custom_call.1} parent=5 // pred_fallthru
        _
      %p153 = scmp.le.s32.totalorder 1, %s15
      %p154 = scmp.lt.s32.totalorder %s15, 3
      %p155 = pnand %p153, %p154
      %p156 = pneg %p155
      // Predicated region
      $region25: #{tpu_custom_call.1} parent=5 // pred_check
        _
      $region26: #{tpu_custom_call.1} parent=5 // pred_check_branch
        %158 = sbr.rel (%p155) target = $region28
      $region27: #{tpu_custom_call.1} parent=5 // pred_region
        %s159 = ssub.s32 %s15, 1
        // Predicated region
        $region29: #{tpu_custom_call.1} parent=27 // pred_check
          %p160 = pneg %p48
        $region30: #{tpu_custom_call.1} parent=27 // pred_check_branch
          %162 = sbr.rel (%p160) target = $region32
        $region31: #{tpu_custom_call.1} parent=27 // pred_region
          %163 = dma.done [#allocation3], 64
        $region32: #{tpu_custom_call.1} parent=27 // pred_fallthru
          _
        %s164 = sand.u32 %s63, 1
        %s165 = scalar_lea.sflag [#allocation6], %s164
        %s166 = sand.u32 %s63, 1
        %s167 = smul.addr %s166, 8
        %s168 = scalar_lea.vmem [#allocation5], %s167
        // Predicated region
        $region33: #{tpu_custom_call.1} parent=27 // pred_check
          %p169 = pneg %p76
        $region34: #{tpu_custom_call.1} parent=27 // pred_check_branch
          %171 = sbr.rel (%p169) target = $region36
        $region35: #{tpu_custom_call.1} parent=27 // pred_region
          %172 = dma.done %s165, 128
        $region36: #{tpu_custom_call.1} parent=27 // pred_fallthru
          _
        %p173 = pneg %p48
        %p174 = pneg %p45
        %s175 = sand.u32 %s63, 1
        %s176 = scalar_lea.sflag [#allocation6], %s175
        %s177 = sand.u32 %s63, 1
        %s178 = smul.addr %s177, 8
        %s179 = scalar_lea.vmem [#allocation5], %s178
        %p180 = pneg %p76
        %p181 = pneg %p73
        %p182 = pneg %p104
        %p183 = pneg %p101
        %s184 = sand.u32 %s91, 1
        %s185 = scalar_lea.sflag [#allocation4], %s184
        %s186 = sand.u32 %s91, 1
        %s187 = smul.addr %s186, 4
        %s188 = scalar_lea.vmem [#allocation7], %s187
        %v189 = vld [vmem:[#allocation2] sm:$0xf]
        %v190 = vld [vmem:[%s168] sm:$0xff]
        %vm191 = vcmask 64512
        %v193 = vsel %vm191, %v189, 0
        %195 = vmatprep.subr.mxu0 0.0
        %196 = vmatpush1.msra.mxu0 0.0
        %197 = vmatprep.subr.mxu0 0.0
        %198 = vmatpush1.msra.mxu0 0.0
        %199 = vmatprep.subr.mxu0 0.0
        %200 = vmatpush1.msra.mxu0 0.0
        %201 = vmatprep.subr.mxu0 0.0
        %202 = vmatpush1.msra.mxu0 0.0
        %203 = vmatprep.subr.mxu0 0.0
        %204 = vmatpush1.msra.mxu0 0.0
        %205 = vmatprep.subr.mxu0 0.0
        %206 = vmatpush1.msra.mxu0 0.0
        %207 = vmatprep.subr.mxu0 0.0
        %208 = vmatpush1.msra.mxu0 0.0
        %209 = vmatprep.subr.mxu0 0.0
        %210 = vmatpush1.msra.mxu0 0.0
        %211 = vmatprep.subr.mxu0 0.0
        %212 = vmatpush1.msra.mxu0 0.0
        %213 = vmatprep.subr.mxu0 0.0
        %214 = vmatpush1.msra.mxu0 0.0
        %215 = vmatprep.subr.mxu0 0.0
        %216 = vmatpush1.msra.mxu0 0.0
        %217 = vmatprep.subr.mxu0 0.0
        %218 = vmatpush1.msra.mxu0 0.0
        %219 = vmatprep.subr.mxu0 0.0
        %220 = vmatpush1.msra.mxu0 0.0
        %221 = vmatprep.subr.mxu0 0.0
        %222 = vmatpush1.msra.mxu0 0.0
        %223 = vmatprep.subr.mxu0 0.0
        %224 = vmatpush1.msra.mxu0 0.0
        %225 = vmatprep.subr.mxu0 0.0
        %226 = vmatpush1.msra.mxu0 %v190
        %227 = vmatprep.subr.mxu0 0.0
        %228 = vmatpush2.msra.mxu0 0.0
        %229 = vmatprep.subr.mxu0 0.0
        %230 = vmatpush2.msra.mxu0 0.0
        %231 = vmatprep.subr.mxu0 0.0
        %232 = vmatpush2.msra.mxu0 0.0
        %233 = vmatprep.subr.mxu0 0.0
        %234 = vmatpush2.msra.mxu0 0.0
        %235 = vmatprep.subr.mxu0 0.0
        %236 = vmatpush2.msra.mxu0 0.0
        %237 = vmatprep.subr.mxu0 0.0
        %238 = vmatpush2.msra.mxu0 0.0
        %239 = vmatprep.subr.mxu0 0.0
        %240 = vmatpush2.msra.mxu0 0.0
        %241 = vmatprep.subr.mxu0 0.0
        %242 = vmatpush2.msra.mxu0 0.0
        %243 = vmatprep.subr.mxu0 0.0
        %244 = vmatpush2.msra.mxu0 0.0
        %245 = vmatprep.subr.mxu0 0.0
        %246 = vmatpush2.msra.mxu0 0.0
        %247 = vmatprep.subr.mxu0 0.0
        %248 = vmatpush2.msra.mxu0 0.0
        %249 = vmatprep.subr.mxu0 0.0
        %250 = vmatpush2.msra.mxu0 0.0
        %251 = vmatprep.subr.mxu0 0.0
        %252 = vmatpush2.msra.mxu0 0.0
        %253 = vmatprep.subr.mxu0 0.0
        %254 = vmatpush2.msra.mxu0 0.0
        %255 = vmatprep.subr.mxu0 0.0
        %256 = vmatpush2.msra.mxu0 0.0
        %257 = vmatprep.subr.mxu0 0.0
        %258 = vmatpush2.msra.mxu0 0.0
        %259 = vmatprep.mubr.f32.mxu0 0.0
        %260 = vmatmul.mubr.f32.gmra.mxu0 %v193
        %v261 = vpop.f32.mrf.mxu0
        %v262 = vadd.f32 0.0, %v261
        %v263 = vpop.f32.mrf.mxu0
        %264 = vdwg.mxu0
        %vm265 = vcmask 257024
        %266 = vst.msk [vmem:[%s188] sm:$0xf] %vm265, %v262
        %s267 = sand.u32 %s91, 1
        %s268 = scalar_lea.sflag [#allocation4], %s267
        %s269 = sand.u32 %s91, 1
        %s270 = smul.addr %s269, 4
        %s271 = scalar_lea.vmem [#allocation7], %s270
        // Predicated region
        $region37: #{tpu_custom_call.1} parent=27 // pred_check
          %p272 = pneg %p101
        $region38: #{tpu_custom_call.1} parent=27 // pred_check_branch
          %274 = sbr.rel (%p272) target = $region40
        $region39: #{tpu_custom_call.1} parent=27 // pred_region
          %s276 = ssub.s32 64, 64
          %277 = vsyncadd %s268, %s276
          %s278 = sadd.s32 %s25, %s24
          %s279 = smul.addr %s278, 64
          %s280 = scalar_lea.hbm %s2, %s279
          %s282 = sshll.u32 %s271, 4
          %s283 = int_to_ptr.vmem [resolvable:$true] %s282
          %285 = dma.vmem_to_hbm [thread:$0]  %s283, 64, %s280, %s268
        $region40: #{tpu_custom_call.1} parent=27 // pred_fallthru
          _
      $region28: #{tpu_custom_call.1} parent=5 // pred_fallthru
        _
      %p286 = scmp.le.s32.totalorder 2, %s15
      // Predicated region
      $region41: #{tpu_custom_call.1} parent=5 // pred_check
        %p287 = pneg %p286
      $region42: #{tpu_custom_call.1} parent=5 // pred_check_branch
        %289 = sbr.rel (%p287) target = $region44
      $region43: #{tpu_custom_call.1} parent=5 // pred_region
        %s290 = ssub.s32 %s15, 2
        // Predicated region
        $region45: #{tpu_custom_call.1} parent=43 // pred_check
          %p291 = pneg %p107
        $region46: #{tpu_custom_call.1} parent=43 // pred_check_branch
          %293 = sbr.rel (%p291) target = $region48
        $region47: #{tpu_custom_call.1} parent=43 // pred_region
          %s294 = sand.u32 %s92, 1
          %s295 = scalar_lea.sflag [#allocation4], %s294
          %s296 = sand.u32 %s92, 1
          %s297 = smul.addr %s296, 4
          %s298 = scalar_lea.vmem [#allocation7], %s297
          %299 = dma.done %s295, 64
        $region48: #{tpu_custom_call.1} parent=43 // pred_fallthru
          _
      $region44: #{tpu_custom_call.1} parent=5 // pred_fallthru
        _
    $region6: #{tpu_custom_call.1} parent=1 // loop_footer
      %s19 = sadd.s32 1, %s15
    $region7: #{tpu_custom_call.1} parent=1 // loop_footer_branch
      %14 = sbr.rel target = $region3
    $region8: #{tpu_custom_call.1} parent=1 // loop_exit
      _
    %300 = vsyncpa [#allocation3], 1
    %s301 = scalar_lea.sflag [#allocation3], 1
    %302 = vsyncpa %s301, 1
    %303 = vsyncpa [#allocation6], 1
    %s304 = scalar_lea.sflag [#allocation6], 1
    %305 = vsyncpa %s304, 1
    %306 = vsyncpa [#allocation4], 1
    %s307 = scalar_lea.sflag [#allocation4], 1
    %308 = vsyncpa %s307, 1

</llo_original>
